<compile_context>
chip_gen: v6e
topology: v6e:2x2x1
jax: 0.10.0
libtpu: 0.0.40
codegen_flags: <defaults>
</compile_context>

<pallas_src>
import functools
import math

import jax
import jax.numpy as jnp
from jax.experimental import pallas as pl
from jax.experimental.pallas import tpu as pltpu

# MXU-native matmul operand dtype. Set to jnp.float32 to restore strict f32
# numerics (at ~3x the MXU cycles on v6e/v7x).
MATMUL_DTYPE = jnp.bfloat16

LANE = 128      # lane width: output padded to a multiple of this (dense stores)
SUBLANE = 8     # sublane granularity for the batch tile


def _round_up(x, m):
    return (x + m - 1) // m * m


def _mlp_kernel(x_ref, w_in_ref, b_in_ref, w_hid_ref, b_hid_ref,
                w_out_ref, b_out_ref, o_ref, *, num_layers):
    # Input layer: ReLU(x @ W_in + b_in). Matmul in bf16, accumulate in f32,
    # bias + ReLU epilogue in f32.
    h = jnp.dot(x_ref[...].astype(MATMUL_DTYPE), w_in_ref[...],
                preferred_element_type=jnp.float32)
    h = jnp.maximum(h + b_in_ref[...], 0.0)

    # Hidden layers. `num_layers` is a small compile-time constant, so a static
    # unroll is fine here.
    # TODO(synk): for large `layers` / hidden sizes, make the layer loop an
    # "arbitrary" grid axis that streams one (H, H) weight block per step (with
    # h in persistent VMEM scratch) instead of keeping the whole stack resident.
    for l in range(num_layers):
        h = jnp.dot(h.astype(MATMUL_DTYPE), w_hid_ref[l],
                    preferred_element_type=jnp.float32)
        h = jnp.maximum(h + b_hid_ref[l], 0.0)

    # Prediction head: no activation. Head weights are lane-padded, so this
    # store is a full-width, unmasked vst.
    out = jnp.dot(h.astype(MATMUL_DTYPE), w_out_ref[...],
                  preferred_element_type=jnp.float32)
    o_ref[...] = (out + b_out_ref[...]).astype(o_ref.dtype)


def net_forward(x, params, *, num_layers, batch_tile=128):
    """Fused MLP forward pass: one pallas_call, gridded over batch tiles."""
    w_in, b_in, w_hid, b_hid, w_out, b_out = params
    batch, n_feature = x.shape
    n_hidden = w_in.shape[1]
    n_output = w_out.shape[1]

    # ---- Lane-dense head: pad (H, O) -> (H, o_pad) once, outside the kernel.
    o_pad = _round_up(max(n_output, LANE), LANE)
    w_out_p = jnp.zeros((n_hidden, o_pad), w_out.dtype).at[:, :n_output].set(w_out)
    b_out_p = jnp.zeros((1, o_pad), b_out.dtype).at[:, :n_output].set(b_out)

    # ---- Batch tiling: pad batch to a sublane multiple; 128-row tiles when big.
    tb = batch_tile if batch >= batch_tile else _round_up(batch, SUBLANE)
    b_padded = _round_up(batch, tb)
    x_p = x if b_padded == batch else jnp.pad(x, ((0, b_padded - batch), (0, 0)))

    grid = (b_padded // tb,)

    # Activations: tiled over the batch grid axis (auto double-buffered).
    # Weights/biases: index_map pinned to block 0 -> fetched once, VMEM-resident
    # across all batch tiles.
    in_specs = [
        pl.BlockSpec((tb, n_feature), lambda i: (i, 0)),     # x tile
        pl.BlockSpec(w_in.shape, lambda i: (0, 0)),          # w_in
        pl.BlockSpec(b_in.shape, lambda i: (0, 0)),          # b_in
        pl.BlockSpec(w_hid.shape, lambda i: (0, 0, 0)),      # w_hid (stacked)
        pl.BlockSpec(b_hid.shape, lambda i: (0, 0, 0)),      # b_hid (stacked)
        pl.BlockSpec(w_out_p.shape, lambda i: (0, 0)),       # w_out (lane-padded)
        pl.BlockSpec(b_out_p.shape, lambda i: (0, 0)),       # b_out (lane-padded)
    ]
    out_specs = pl.BlockSpec((tb, o_pad), lambda i: (i, 0))

    # ---- VMEM budget check (x2 for double-buffering). Must fit the most
    # constrained chip (v7x: 64 MiB physical / 32 MiB scoped default).
    def _nbytes(shape, dtype):
        return math.prod(shape) * jnp.dtype(dtype).itemsize

    footprint = 2 * (_nbytes((tb, n_feature), x.dtype)
                     + _nbytes((tb, o_pad), jnp.float32)
                     + _nbytes(w_in.shape, w_in.dtype)
                     + _nbytes(b_in.shape, b_in.dtype)
                     + _nbytes(w_hid.shape, w_hid.dtype)
                     + _nbytes(b_hid.shape, b_hid.dtype)
                     + _nbytes(w_out_p.shape, w_out_p.dtype)
                     + _nbytes(b_out_p.shape, b_out_p.dtype))
    vmem_limit = 32 * 1024 * 1024
    assert footprint < vmem_limit, (
        "resident-weight VMEM footprint too large; stream hidden layers via a "
        "grid axis (see TODO in _mlp_kernel)")

    out_padded = pl.pallas_call(
        functools.partial(_mlp_kernel, num_layers=num_layers),
        out_shape=jax.ShapeDtypeStruct((b_padded, o_pad), jnp.float32),
        grid=grid,
        in_specs=in_specs,
        out_specs=out_specs,
        compiler_params=pltpu.CompilerParams(
            dimension_semantics=("parallel",),   # batch tiles across TCs (v7x)
            vmem_limit_bytes=vmem_limit),
    )(x_p, w_in, b_in, w_hid, b_hid, w_out_p, b_out_p)

    # Strip batch padding and lane padding.
    return out_padded[:batch, :n_output]


def init_params(key, n_feature, n_hidden, n_output, layers):
    """Deterministic f32 parameter init (shapes match torch.nn.Linear, transposed)."""
    ks = jax.random.split(key, 6)
    scale = 0.1
    w_in = scale * jax.random.normal(ks[0], (n_feature, n_hidden), jnp.float32)
    b_in = scale * jax.random.normal(ks[1], (1, n_hidden), jnp.float32)
    w_hid = scale * jax.random.normal(ks[2], (layers, n_hidden, n_hidden), jnp.float32)
    b_hid = scale * jax.random.normal(ks[3], (layers, 1, n_hidden), jnp.float32)
    w_out = scale * jax.random.normal(ks[4], (n_hidden, n_output), jnp.float32)
    b_out = scale * jax.random.normal(ks[5], (1, n_output), jnp.float32)
    return (w_in, b_in, w_hid, b_hid, w_out, b_out)


def to_device_params(params_f32):
    """Weights stored in HBM as MATMUL_DTYPE (MXU-native); biases stay f32."""
    w_in, b_in, w_hid, b_hid, w_out, b_out = params_f32
    return (w_in.astype(MATMUL_DTYPE), b_in,
            w_hid.astype(MATMUL_DTYPE), b_hid,
            w_out.astype(MATMUL_DTYPE), b_out)


def net_forward_ref(x, params_f32, *, num_layers):
    """Pure-JAX reference with the same dtype pipeline as the kernel."""
    w_in, b_in, w_hid, b_hid, w_out, b_out = params_f32

    def mm(a, w):
        return jnp.dot(a.astype(MATMUL_DTYPE), w.astype(MATMUL_DTYPE),
                       preferred_element_type=jnp.float32)

    h = jnp.maximum(mm(x, w_in) + b_in, 0.0)
    for l in range(num_layers):
        h = jnp.maximum(mm(h, w_hid[l]) + b_hid[l], 0.0)
    return mm(h, w_out) + b_out


def net_forward_ref_f32(x, params_f32, *, num_layers):
    """Strict f32 reference (PyTorch semantics) for a loose sanity check."""
    w_in, b_in, w_hid, b_hid, w_out, b_out = params_f32
    h = jnp.maximum(x @ w_in + b_in, 0.0)
    for l in range(num_layers):
        h = jnp.maximum(h @ w_hid[l] + b_hid[l], 0.0)
    return h @ w_out + b_out


if __name__ == "__main__":
    n_feature, n_hidden, n_output, layers = 16, 32, 1, 2
    batch = 8

    key = jax.random.PRNGKey(0)
    k_x, k_p = jax.random.split(key)
    x = jax.random.normal(k_x, (batch, n_feature), jnp.float32)
    params_f32 = init_params(k_p, n_feature, n_hidden, n_output, layers)
    params_dev = to_device_params(params_f32)

    out = net_forward(x, params_dev, num_layers=layers)
    out = jax.block_until_ready(out)
    assert out.shape == (batch, n_output)

    # Dtype-matched reference (same bf16-operand / f32-accumulate pipeline).
    ref = net_forward_ref(x, params_f32, num_layers=layers)
    assert jnp.allclose(out, ref, atol=1e-4, rtol=1e-4), "mismatch vs bf16 reference"

    # Loose sanity check vs. strict-f32 PyTorch semantics.
    ref32 = net_forward_ref_f32(x, params_f32, num_layers=layers)
    assert jnp.allclose(out, ref32, atol=5e-2, rtol=5e-2), "mismatch vs f32 reference"

    print("KERNEL_OK")
</pallas_src>

<mosaic_0001>
module attributes {stable_mosaic.version = 11 : i64} {
  func.func @_mlp_kernel(%arg0: i32, %arg1: memref<8x16xf32, #tpu.memory_space<vmem>>, %arg2: memref<16x32xbf16, #tpu.memory_space<vmem>>, %arg3: memref<1x32xf32, #tpu.memory_space<vmem>>, %arg4: memref<2x32x32xbf16, #tpu.memory_space<vmem>>, %arg5: memref<2x1x32xf32, #tpu.memory_space<vmem>>, %arg6: memref<32x128xbf16, #tpu.memory_space<vmem>>, %arg7: memref<1x128xf32, #tpu.memory_space<vmem>>, %arg8: memref<8x128xf32, #tpu.memory_space<vmem>>) attributes {dimension_semantics = [#tpu.dimension_semantics<parallel>], iteration_bounds = array<i64: 1>, scalar_prefetch = 0 : i64, scratch_operands = 0 : i64, tpu.core_type = #tpu.core_type<tc>, window_params = [{transform_indices = @transform_0, window_bounds = array<i64: 8, 16>}, {pipeline_mode = #tpu.pipeline_mode<synchronous>, transform_indices = @transform_1, window_bounds = array<i64: 16, 32>}, {pipeline_mode = #tpu.pipeline_mode<synchronous>, transform_indices = @transform_2, window_bounds = array<i64: 1, 32>}, {pipeline_mode = #tpu.pipeline_mode<synchronous>, transform_indices = @transform_3, window_bounds = array<i64: 2, 32, 32>}, {pipeline_mode = #tpu.pipeline_mode<synchronous>, transform_indices = @transform_4, window_bounds = array<i64: 2, 1, 32>}, {pipeline_mode = #tpu.pipeline_mode<synchronous>, transform_indices = @transform_5, window_bounds = array<i64: 32, 128>}, {pipeline_mode = #tpu.pipeline_mode<synchronous>, transform_indices = @transform_6, window_bounds = array<i64: 1, 128>}, {transform_indices = @transform_7, window_bounds = array<i64: 8, 128>}]} {
    %c0 = arith.constant 0 : index
    %c0_0 = arith.constant 0 : index
    %0 = vector.load %arg1[%c0, %c0_0] : memref<8x16xf32, #tpu.memory_space<vmem>>, vector<8x16xf32>
    %1 = arith.truncf %0 : vector<8x16xf32> to vector<8x16xbf16>
    %c0_1 = arith.constant 0 : index
    %c0_2 = arith.constant 0 : index
    %2 = vector.load %arg2[%c0_1, %c0_2] : memref<16x32xbf16, #tpu.memory_space<vmem>>, vector<16x32xbf16>
    %cst = arith.constant dense<0.000000e+00> : vector<8x32xf32>
    %3 = tpu.matmul %1, %2, %cst {dimension_numbers = #tpu.dot_dimension_numbers<[1], [0], [0], [1], [0, 0, 1, 1], [], []>} : vector<8x16xbf16>, vector<16x32xbf16>, vector<8x32xf32> -> vector<8x32xf32>
    %c0_3 = arith.constant 0 : index
    %c0_4 = arith.constant 0 : index
    %4 = vector.load %arg3[%c0_3, %c0_4] : memref<1x32xf32, #tpu.memory_space<vmem>>, vector<1x32xf32>
    %5 = vector.broadcast %4 : vector<1x32xf32> to vector<8x32xf32>
    %6 = arith.addf %3, %5 : vector<8x32xf32>
    %cst_5 = arith.constant 0.000000e+00 : f32
    %7 = vector.broadcast %cst_5 : f32 to vector<8x32xf32>
    %8 = arith.maximumf %6, %7 : vector<8x32xf32>
    %9 = arith.truncf %8 : vector<8x32xf32> to vector<8x32xbf16>
    %c0_6 = arith.constant 0 : index
    %c0_7 = arith.constant 0 : index
    %c0_8 = arith.constant 0 : index
    %10 = vector.load %arg4[%c0_6, %c0_7, %c0_8] : memref<2x32x32xbf16, #tpu.memory_space<vmem>>, vector<1x32x32xbf16>
    %11 = vector.shape_cast %10 : vector<1x32x32xbf16> to vector<32x32xbf16>
    %cst_9 = arith.constant dense<0.000000e+00> : vector<8x32xf32>
    %12 = tpu.matmul %9, %11, %cst_9 {dimension_numbers = #tpu.dot_dimension_numbers<[1], [0], [0], [1], [0, 0, 1, 1], [], []>} : vector<8x32xbf16>, vector<32x32xbf16>, vector<8x32xf32> -> vector<8x32xf32>
    %c0_10 = arith.constant 0 : index
    %c0_11 = arith.constant 0 : index
    %c0_12 = arith.constant 0 : index
    %13 = vector.load %arg5[%c0_10, %c0_11, %c0_12] : memref<2x1x32xf32, #tpu.memory_space<vmem>>, vector<1x1x32xf32>
    %14 = vector.shape_cast %13 : vector<1x1x32xf32> to vector<1x32xf32>
    %15 = vector.broadcast %14 : vector<1x32xf32> to vector<8x32xf32>
    %16 = arith.addf %12, %15 : vector<8x32xf32>
    %cst_13 = arith.constant 0.000000e+00 : f32
    %17 = vector.broadcast %cst_13 : f32 to vector<8x32xf32>
    %18 = arith.maximumf %16, %17 : vector<8x32xf32>
    %19 = arith.truncf %18 : vector<8x32xf32> to vector<8x32xbf16>
    %c1 = arith.constant 1 : index
    %c0_14 = arith.constant 0 : index
    %c0_15 = arith.constant 0 : index
    %20 = vector.load %arg4[%c1, %c0_14, %c0_15] : memref<2x32x32xbf16, #tpu.memory_space<vmem>>, vector<1x32x32xbf16>
    %21 = vector.shape_cast %20 : vector<1x32x32xbf16> to vector<32x32xbf16>
    %cst_16 = arith.constant dense<0.000000e+00> : vector<8x32xf32>
    %22 = tpu.matmul %19, %21, %cst_16 {dimension_numbers = #tpu.dot_dimension_numbers<[1], [0], [0], [1], [0, 0, 1, 1], [], []>} : vector<8x32xbf16>, vector<32x32xbf16>, vector<8x32xf32> -> vector<8x32xf32>
    %c1_17 = arith.constant 1 : index
    %c0_18 = arith.constant 0 : index
    %c0_19 = arith.constant 0 : index
    %23 = vector.load %arg5[%c1_17, %c0_18, %c0_19] : memref<2x1x32xf32, #tpu.memory_space<vmem>>, vector<1x1x32xf32>
    %24 = vector.shape_cast %23 : vector<1x1x32xf32> to vector<1x32xf32>
    %25 = vector.broadcast %24 : vector<1x32xf32> to vector<8x32xf32>
    %26 = arith.addf %22, %25 : vector<8x32xf32>
    %cst_20 = arith.constant 0.000000e+00 : f32
    %27 = vector.broadcast %cst_20 : f32 to vector<8x32xf32>
    %28 = arith.maximumf %26, %27 : vector<8x32xf32>
    %29 = arith.truncf %28 : vector<8x32xf32> to vector<8x32xbf16>
    %c0_21 = arith.constant 0 : index
    %c0_22 = arith.constant 0 : index
    %30 = vector.load %arg6[%c0_21, %c0_22] : memref<32x128xbf16, #tpu.memory_space<vmem>>, vector<32x128xbf16>
    %cst_23 = arith.constant dense<0.000000e+00> : vector<8x128xf32>
    %31 = tpu.matmul %29, %30, %cst_23 {dimension_numbers = #tpu.dot_dimension_numbers<[1], [0], [0], [1], [0, 0, 1, 1], [], []>} : vector<8x32xbf16>, vector<32x128xbf16>, vector<8x128xf32> -> vector<8x128xf32>
    %c0_24 = arith.constant 0 : index
    %c0_25 = arith.constant 0 : index
    %32 = vector.load %arg7[%c0_24, %c0_25] : memref<1x128xf32, #tpu.memory_space<vmem>>, vector<1x128xf32>
    %33 = vector.broadcast %32 : vector<1x128xf32> to vector<8x128xf32>
    %34 = arith.addf %31, %33 : vector<8x128xf32>
    %c0_26 = arith.constant 0 : index
    %c0_27 = arith.constant 0 : index
    %35 = vector.load %arg8[%c0_26, %c0_27] : memref<8x128xf32, #tpu.memory_space<vmem>>, vector<8x128xf32>
    tpu.vector_store %arg8[%c0_26, %c0_27], %34 {strides = array<i32>} : memref<8x128xf32, #tpu.memory_space<vmem>>, vector<8x128xf32>,
    return
  }
  func.func @transform_0(%arg0: i32) -> (i32, i32) {
    %c0_i32 = arith.constant 0 : i32
    %c0_i32_0 = arith.constant 0 : i32
    return %arg0, %c0_i32 : i32, i32
  }
  func.func @transform_1(%arg0: i32) -> (i32, i32) {
    %c0_i32 = arith.constant 0 : i32
    %c0_i32_0 = arith.constant 0 : i32
    %c0_i32_1 = arith.constant 0 : i32
    return %c0_i32, %c0_i32_0 : i32, i32
  }
  func.func @transform_2(%arg0: i32) -> (i32, i32) {
    %c0_i32 = arith.constant 0 : i32
    %c0_i32_0 = arith.constant 0 : i32
    %c0_i32_1 = arith.constant 0 : i32
    return %c0_i32, %c0_i32_0 : i32, i32
  }
  func.func @transform_3(%arg0: i32) -> (i32, i32, i32) {
    %c0_i32 = arith.constant 0 : i32
    %c0_i32_0 = arith.constant 0 : i32
    %c0_i32_1 = arith.constant 0 : i32
    %c0_i32_2 = arith.constant 0 : i32
    return %c0_i32, %c0_i32_0, %c0_i32_1 : i32, i32, i32
  }
  func.func @transform_4(%arg0: i32) -> (i32, i32, i32) {
    %c0_i32 = arith.constant 0 : i32
    %c0_i32_0 = arith.constant 0 : i32
    %c0_i32_1 = arith.constant 0 : i32
    %c0_i32_2 = arith.constant 0 : i32
    return %c0_i32, %c0_i32_0, %c0_i32_1 : i32, i32, i32
  }
  func.func @transform_5(%arg0: i32) -> (i32, i32) {
    %c0_i32 = arith.constant 0 : i32
    %c0_i32_0 = arith.constant 0 : i32
    %c0_i32_1 = arith.constant 0 : i32
    return %c0_i32, %c0_i32_0 : i32, i32
  }
  func.func @transform_6(%arg0: i32) -> (i32, i32) {
    %c0_i32 = arith.constant 0 : i32
    %c0_i32_0 = arith.constant 0 : i32
    %c0_i32_1 = arith.constant 0 : i32
    return %c0_i32, %c0_i32_0 : i32, i32
  }
  func.func @transform_7(%arg0: i32) -> (i32, i32) {
    %c0_i32 = arith.constant 0 : i32
    %c0_i32_0 = arith.constant 0 : i32
    return %arg0, %c0_i32 : i32, i32
  }
}

</mosaic_0001>

<llo_original>
// kernel: tpu_custom_call.1
$region0: #{tpu_custom_call.1}
  #allocation0 [shape = 'u32[]', space=smem, size = 0x4, offset = 0x4, fixed_abs, tag = 'smem constant byte address 0x4 - core index']
  #allocation1 [shape = 'u32[144,128]{1,0:T(1,128)}', space=vmem, size = 0x12000, scoped, tag = 'internal scratch']
  %s0 = inlined_call_operand.hbm [shape: f32[8,16], index: 0, kind: input, shape index: {}]
  %s1 = inlined_call_operand.hbm [shape: bf16[16,32], index: 1, kind: input, shape index: {}]
  %s2 = inlined_call_operand.vmem [shape: f32[1,32], index: 2, kind: input, shape index: {}]
  %s3 = inlined_call_operand.hbm [shape: bf16[2,32,32], index: 3, kind: input, shape index: {}]
  %s4 = inlined_call_operand.vmem [shape: f32[2,1,32], index: 4, kind: input, shape index: {}]
  %s5 = inlined_call_operand.hbm [shape: bf16[32,128], index: 5, kind: input, shape index: {}]
  %s6 = inlined_call_operand.vmem [shape: f32[1,128], index: 6, kind: input, shape index: {}]
  %s7 = inlined_call_operand.hbm [shape: f32[8,128], index: 7, kind: output, shape index: {}]
  %s8 = sld [smem:[#allocation0]]
  $region54: #{tpu_custom_call.1} parent=0
    _
  %s10 = ssub.s32 1, %s8
  %s11 = scalar_select 0, %s10, %s8
  $region1: #{tpu_custom_call.1} parent=0
    #allocation2 [shape = 'u8[4096]{0}', space=vmem, size = 0x1000, scoped, tag = 'input window, operand 0, single buffered']
    #allocation3 [shape = 's32[1]{0}', space=sflag, size = 0x4, scoped, tag = 'scoped memory for tpu_custom_call.1']
    #allocation4 [shape = 's32[1]{0}', space=sflag, size = 0x4, scoped, tag = 'scoped memory for tpu_custom_call.1']
    #allocation5 [shape = 'u8[4096]{0}', space=vmem, size = 0x1000, scoped, tag = 'input window, operand 1, single buffered']
    #allocation6 [shape = 's32[1]{0}', space=sflag, size = 0x4, scoped, tag = 'scoped memory for tpu_custom_call.1']
    #allocation7 [shape = 'u8[16384]{0}', space=vmem, size = 0x4000, scoped, tag = 'input window, operand 3, single buffered']
    #allocation8 [shape = 'u8[8192]{0}', space=vmem, size = 0x2000, scoped, tag = 'input window, operand 5, single buffered']
    #allocation9 [shape = 's32[1]{0}', space=sflag, size = 0x4, scoped, tag = 'scoped memory for tpu_custom_call.1']
    #allocation10 [shape = 'u8[4096]{0}', space=vmem, size = 0x1000, scoped, tag = 'output window, operand 0, single buffered']
    %12 = vsyncpa [#allocation3], 0
    %13 = vsyncpa [#allocation6], 0
    %14 = vsyncpa [#allocation9], 0
    %15 = vsyncpa [#allocation4], 0
    // Predicated region
    $region2: #{tpu_custom_call.1} parent=1 // pred_check
      _
    $region3: #{tpu_custom_call.1} parent=1 // pred_check_branch
      %17 = sbr.rel (0) target = $region5
    $region4: #{tpu_custom_call.1} parent=1 // pred_region
      %s19 = ssub.s32 128, 128
      %20 = vsyncadd [#allocation3], %s19
      %s22 = sshll.u32 [#allocation2], 4
      %s23 = int_to_ptr.vmem [resolvable:$true] %s22
      %25 = dma.hbm_to_vmem [thread:$0]  %s0, 128, %s23, [#allocation3]
    $region5: #{tpu_custom_call.1} parent=1 // pred_fallthru
      _
    // Predicated region
    $region6: #{tpu_custom_call.1} parent=1 // pred_check
      _
    $region7: #{tpu_custom_call.1} parent=1 // pred_check_branch
      %27 = sbr.rel (0) target = $region9
    $region8: #{tpu_custom_call.1} parent=1 // pred_region
      %s29 = ssub.s32 128, 128
      %30 = vsyncadd [#allocation6], %s29
      %s31 = sshll.u32 [#allocation5], 4
      %s32 = int_to_ptr.vmem [resolvable:$true] %s31
      %37 = dma.hbm_to_vmem [thread:$0]  %s1, 128, %s32, [#allocation6], 64, 64, 4
    $region9: #{tpu_custom_call.1} parent=1 // pred_fallthru
      _
    // Predicated region
    $region10: #{tpu_custom_call.1} parent=1 // pred_check
      _
    $region11: #{tpu_custom_call.1} parent=1 // pred_check_branch
      %39 = sbr.rel (0) target = $region13
    $region12: #{tpu_custom_call.1} parent=1 // pred_region
      _
    $region13: #{tpu_custom_call.1} parent=1 // pred_fallthru
      _
    // Predicated region
    $region14: #{tpu_custom_call.1} parent=1 // pred_check
      _
    $region15: #{tpu_custom_call.1} parent=1 // pred_check_branch
      %41 = sbr.rel (0) target = $region17
    $region16: #{tpu_custom_call.1} parent=1 // pred_region
      %s43 = ssub.s32 512, 512
      %44 = vsyncadd [#allocation6], %s43
      %s45 = sshll.u32 [#allocation7], 4
      %s46 = int_to_ptr.vmem [resolvable:$true] %s45
      %51 = dma.hbm_to_vmem [thread:$0]  %s3, 512, %s46, [#allocation6], 64, 64, 4
    $region17: #{tpu_custom_call.1} parent=1 // pred_fallthru
      _
    // Predicated region
    $region18: #{tpu_custom_call.1} parent=1 // pred_check
      _
    $region19: #{tpu_custom_call.1} parent=1 // pred_check_branch
      %53 = sbr.rel (0) target = $region21
    $region20: #{tpu_custom_call.1} parent=1 // pred_region
      _
    $region21: #{tpu_custom_call.1} parent=1 // pred_fallthru
      _
    // Predicated region
    $region22: #{tpu_custom_call.1} parent=1 // pred_check
      _
    $region23: #{tpu_custom_call.1} parent=1 // pred_check_branch
      %55 = sbr.rel (0) target = $region25
    $region24: #{tpu_custom_call.1} parent=1 // pred_region
      %s57 = ssub.s32 256, 256
      %58 = vsyncadd [#allocation9], %s57
      %s59 = sshll.u32 [#allocation8], 4
      %s60 = int_to_ptr.vmem [resolvable:$true] %s59
      %65 = dma.hbm_to_vmem [thread:$0]  %s5, 256, %s60, [#allocation9], 64, 64, 4
    $region25: #{tpu_custom_call.1} parent=1 // pred_fallthru
      _
    // Predicated region
    $region26: #{tpu_custom_call.1} parent=1 // pred_check
      _
    $region27: #{tpu_custom_call.1} parent=1 // pred_check_branch
      %67 = sbr.rel (0) target = $region29
    $region28: #{tpu_custom_call.1} parent=1 // pred_region
      _
    $region29: #{tpu_custom_call.1} parent=1 // pred_fallthru
      _
    // Predicated region
    $region30: #{tpu_custom_call.1} parent=1 // pred_check
      _
    $region31: #{tpu_custom_call.1} parent=1 // pred_check_branch
      %69 = sbr.rel (0) target = $region33
    $region32: #{tpu_custom_call.1} parent=1 // pred_region
      %70 = dma.done [#allocation3], 128
    $region33: #{tpu_custom_call.1} parent=1 // pred_fallthru
      _
    // Predicated region
    $region34: #{tpu_custom_call.1} parent=1 // pred_check
      _
    $region35: #{tpu_custom_call.1} parent=1 // pred_check_branch
      %72 = sbr.rel (0) target = $region37
    $region36: #{tpu_custom_call.1} parent=1 // pred_region
      %73 = dma.done [#allocation6], 128
    $region37: #{tpu_custom_call.1} parent=1 // pred_fallthru
      _
    // Predicated region
    $region38: #{tpu_custom_call.1} parent=1 // pred_check
      _
    $region39: #{tpu_custom_call.1} parent=1 // pred_check_branch
      %75 = sbr.rel (0) target = $region41
    $region40: #{tpu_custom_call.1} parent=1 // pred_region
      %76 = dma.done [#allocation6], 512
    $region41: #{tpu_custom_call.1} parent=1 // pred_fallthru
      _
    // Predicated region
    $region42: #{tpu_custom_call.1} parent=1 // pred_check
      _
    $region43: #{tpu_custom_call.1} parent=1 // pred_check_branch
      %78 = sbr.rel (0) target = $region45
    $region44: #{tpu_custom_call.1} parent=1 // pred_region
      %79 = dma.done [#allocation9], 256
    $region45: #{tpu_custom_call.1} parent=1 // pred_fallthru
      _
    %v81 = vld [vmem:[#allocation2] sm:$0xff]
    %v82 = vpack.c.bf16 %v81, %v81
    %v83 = vld [vmem:[#allocation5] sm:$0xf]
    %v84 = vld [vmem:[#allocation5 + $0x4] sm:$0xf]
    %v85 = vld [vmem:[%s2] sm:$0x1]
    %v87 = vlaneseq
    %v88 = vshrl.u32 %v87, 7
    %v89 = vsub.s32 0, %v88
    %v90 = vrot.slane %v85, %v89
    %v94 = vunpack.c.l.b16 %v83
    %v95 = vunpack.c.l.b16 %v84
    %v96 = vpack.c.b16 %v95, %v94
    %vm98 = vcmask 130048
    %v100 = vsel %vm98, %v82, 0
    %102 = vmatprep.subr.bf16.mxu0 0
    %103 = vmatpush1.bf16.msra.mxu0 0
    %104 = vmatprep.subr.bf16.mxu0 0
    %105 = vmatpush1.bf16.msra.mxu0 0
    %106 = vmatprep.subr.bf16.mxu0 0
    %107 = vmatpush1.bf16.msra.mxu0 0
    %108 = vmatprep.subr.bf16.mxu0 0
    %109 = vmatpush1.bf16.msra.mxu0 0
    %110 = vmatprep.subr.bf16.mxu0 0
    %111 = vmatpush1.bf16.msra.mxu0 0
    %112 = vmatprep.subr.bf16.mxu0 0
    %113 = vmatpush1.bf16.msra.mxu0 0
    %114 = vmatprep.subr.bf16.mxu0 0
    %115 = vmatpush1.bf16.msra.mxu0 0
    %116 = vmatprep.subr.bf16.mxu0 0
    %117 = vmatpush1.bf16.msra.mxu0 %v96
    %118 = vmatprep.subr.bf16.mxu0 0
    %119 = vmatpush2.bf16.msra.mxu0 0
    %120 = vmatprep.subr.bf16.mxu0 0
    %121 = vmatpush2.bf16.msra.mxu0 0
    %122 = vmatprep.subr.bf16.mxu0 0
    %123 = vmatpush2.bf16.msra.mxu0 0
    %124 = vmatprep.subr.bf16.mxu0 0
    %125 = vmatpush2.bf16.msra.mxu0 0
    %126 = vmatprep.subr.bf16.mxu0 0
    %127 = vmatpush2.bf16.msra.mxu0 0
    %128 = vmatprep.subr.bf16.mxu0 0
    %129 = vmatpush2.bf16.msra.mxu0 0
    %130 = vmatprep.subr.bf16.mxu0 0
    %131 = vmatpush2.bf16.msra.mxu0 0
    %132 = vmatprep.subr.bf16.mxu0 0
    %133 = vmatpush2.bf16.msra.mxu0 0
    %134 = vmatprep.mubr.bf16.mxu0 0
    %135 = vmatmul.mubr.bf16.gmra.mxu0 %v100
    %v136 = vpop.f32.mrf.mxu0
    %v137 = vadd.f32 %v90, %v136
    %v138 = vpop.f32.mrf.mxu0
    %v139 = vpop.f32.mrf.mxu0
    %v140 = vpop.f32.mrf.mxu0
    %141 = vdwg.mxu0
    %v142 = vmax.f32 %v137, 0.0
    %v143 = vpack.c.bf16 %v142, %v142
    %v144 = vld [vmem:[#allocation7] sm:$0xf]
    %v145 = vld [vmem:[#allocation7 + $0x4] sm:$0xf]
    %v146 = vld [vmem:[#allocation7 + $0x8] sm:$0xf]
    %v147 = vld [vmem:[#allocation7 + $0xc] sm:$0xf]
    %v148 = vld [vmem:[%s4] sm:$0x1]
    %v150 = vlaneseq
    %v151 = vshrl.u32 %v150, 7
    %v152 = vsub.s32 0, %v151
    %v153 = vrot.slane %v148, %v152
    %v159 = vunpack.c.l.b16 %v144
    %v160 = vunpack.c.l.b16 %v145
    %v161 = vunpack.c.l.b16 %v146
    %v162 = vunpack.c.l.b16 %v147
    %v163 = vpack.c.b16 %v160, %v159
    %v164 = vpack.c.b16 %v162, %v161
    %vm167 = vcmask 261120
    %v169 = vsel %vm167, %v143, 0
    %171 = vmatprep.subr.bf16.mxu0 0
    %172 = vmatpush1.bf16.msra.mxu0 0
    %173 = vmatprep.subr.bf16.mxu0 0
    %174 = vmatpush1.bf16.msra.mxu0 0
    %175 = vmatprep.subr.bf16.mxu0 0
    %176 = vmatpush1.bf16.msra.mxu0 0
    %177 = vmatprep.subr.bf16.mxu0 0
    %178 = vmatpush1.bf16.msra.mxu0 0
    %179 = vmatprep.subr.bf16.mxu0 0
    %180 = vmatpush1.bf16.msra.mxu0 0
    %181 = vmatprep.subr.bf16.mxu0 0
    %182 = vmatpush1.bf16.msra.mxu0 0
    %183 = vmatprep.subr.bf16.mxu0 0
    %184 = vmatpush1.bf16.msra.mxu0 %v164
    %185 = vmatprep.subr.bf16.mxu0 0
    %186 = vmatpush1.bf16.msra.mxu0 %v163
    %187 = vmatprep.subr.bf16.mxu0 0
    %188 = vmatpush2.bf16.msra.mxu0 0
    %189 = vmatprep.subr.bf16.mxu0 0
    %190 = vmatpush2.bf16.msra.mxu0 0
    %191 = vmatprep.subr.bf16.mxu0 0
    %192 = vmatpush2.bf16.msra.mxu0 0
    %193 = vmatprep.subr.bf16.mxu0 0
    %194 = vmatpush2.bf16.msra.mxu0 0
    %195 = vmatprep.subr.bf16.mxu0 0
    %196 = vmatpush2.bf16.msra.mxu0 0
    %197 = vmatprep.subr.bf16.mxu0 0
    %198 = vmatpush2.bf16.msra.mxu0 0
    %199 = vmatprep.subr.bf16.mxu0 0
    %200 = vmatpush2.bf16.msra.mxu0 0
    %201 = vmatprep.subr.bf16.mxu0 0
    %202 = vmatpush2.bf16.msra.mxu0 0
    %203 = vmatprep.mubr.bf16.mxu0 0
    %204 = vmatmul.mubr.bf16.gmra.mxu0 %v169
    %v205 = vpop.f32.mrf.mxu0
    %v206 = vadd.f32 %v153, %v205
    %v207 = vpop.f32.mrf.mxu0
    %v208 = vpop.f32.mrf.mxu0
    %v209 = vpop.f32.mrf.mxu0
    %210 = vdwg.mxu0
    %v211 = vmax.f32 %v206, 0.0
    %v212 = vpack.c.bf16 %v211, %v211
    %s213 = scalar_lea.vmem [#allocation7], 16
    %v214 = vld [vmem:[%s213] sm:$0xf]
    %v215 = vld [vmem:[%s213 + $0x4] sm:$0xf]
    %v216 = vld [vmem:[%s213 + $0x8] sm:$0xf]
    %v217 = vld [vmem:[%s213 + $0xc] sm:$0xf]
    %s218 = scalar_lea.vmem %s4, 1
    %v219 = vld [vmem:[%s218] sm:$0x1]
    %v221 = vlaneseq
    %v222 = vshrl.u32 %v221, 7
    %v223 = vsub.s32 0, %v222
    %v224 = vrot.slane %v219, %v223
    %v230 = vunpack.c.l.b16 %v214
    %v231 = vunpack.c.l.b16 %v215
    %v232 = vunpack.c.l.b16 %v216
    %v233 = vunpack.c.l.b16 %v217
    %v234 = vpack.c.b16 %v231, %v230
    %v235 = vpack.c.b16 %v233, %v232
    %v239 = vsel %vm167, %v212, 0
    %241 = vmatprep.subr.bf16.mxu0 0
    %242 = vmatpush1.bf16.msra.mxu0 0
    %243 = vmatprep.subr.bf16.mxu0 0
    %244 = vmatpush1.bf16.msra.mxu0 0
    %245 = vmatprep.subr.bf16.mxu0 0
    %246 = vmatpush1.bf16.msra.mxu0 0
    %247 = vmatprep.subr.bf16.mxu0 0
    %248 = vmatpush1.bf16.msra.mxu0 0
    %249 = vmatprep.subr.bf16.mxu0 0
    %250 = vmatpush1.bf16.msra.mxu0 0
    %251 = vmatprep.subr.bf16.mxu0 0
    %252 = vmatpush1.bf16.msra.mxu0 0
    %253 = vmatprep.subr.bf16.mxu0 0
    %254 = vmatpush1.bf16.msra.mxu0 %v235
    %255 = vmatprep.subr.bf16.mxu0 0
    %256 = vmatpush1.bf16.msra.mxu0 %v234
    %257 = vmatprep.subr.bf16.mxu0 0
    %258 = vmatpush2.bf16.msra.mxu0 0
    %259 = vmatprep.subr.bf16.mxu0 0
    %260 = vmatpush2.bf16.msra.mxu0 0
    %261 = vmatprep.subr.bf16.mxu0 0
    %262 = vmatpush2.bf16.msra.mxu0 0
    %263 = vmatprep.subr.bf16.mxu0 0
    %264 = vmatpush2.bf16.msra.mxu0 0
    %265 = vmatprep.subr.bf16.mxu0 0
    %266 = vmatpush2.bf16.msra.mxu0 0
    %267 = vmatprep.subr.bf16.mxu0 0
    %268 = vmatpush2.bf16.msra.mxu0 0
    %269 = vmatprep.subr.bf16.mxu0 0
    %270 = vmatpush2.bf16.msra.mxu0 0
    %271 = vmatprep.subr.bf16.mxu0 0
    %272 = vmatpush2.bf16.msra.mxu0 0
    %273 = vmatprep.mubr.bf16.mxu0 0
    %274 = vmatmul.mubr.bf16.gmra.mxu0 %v239
    %v275 = vpop.f32.mrf.mxu0
    %v276 = vadd.f32 %v224, %v275
    %v277 = vpop.f32.mrf.mxu0
    %v278 = vpop.f32.mrf.mxu0
    %v279 = vpop.f32.mrf.mxu0
    %280 = vdwg.mxu0
    %v281 = vmax.f32 %v276, 0.0
    %v282 = vpack.c.bf16 %v281, %v281
    %v283 = vld [vmem:[#allocation8] sm:$0xf]
    %v284 = vld [vmem:[#allocation8 + $0x4] sm:$0xf]
    %v285 = vld [vmem:[#allocation8 + $0x8] sm:$0xf]
    %v286 = vld [vmem:[#allocation8 + $0xc] sm:$0xf]
    %v287 = vld [vmem:[%s6] sm:$0x1]
    %v289 = vlaneseq
    %v290 = vshrl.u32 %v289, 7
    %v291 = vsub.s32 0, %v290
    %v292 = vrot.slane %v287, %v291
    %v298 = vunpack.c.l.b16 %v283
    %v299 = vunpack.c.l.b16 %v284
    %v300 = vunpack.c.l.b16 %v285
    %v301 = vunpack.c.l.b16 %v286
    %v302 = vpack.c.b16 %v299, %v298
    %v303 = vpack.c.b16 %v301, %v300
    %v307 = vsel %vm167, %v282, 0
    %309 = vmatprep.subr.bf16.mxu0 0
    %310 = vmatpush1.bf16.msra.mxu0 0
    %311 = vmatprep.subr.bf16.mxu0 0
    %312 = vmatpush1.bf16.msra.mxu0 0
    %313 = vmatprep.subr.bf16.mxu0 0
    %314 = vmatpush1.bf16.msra.mxu0 0
    %315 = vmatprep.subr.bf16.mxu0 0
    %316 = vmatpush1.bf16.msra.mxu0 0
    %317 = vmatprep.subr.bf16.mxu0 0
    %318 = vmatpush1.bf16.msra.mxu0 0
    %319 = vmatprep.subr.bf16.mxu0 0
    %320 = vmatpush1.bf16.msra.mxu0 0
    %321 = vmatprep.subr.bf16.mxu0 0
    %322 = vmatpush1.bf16.msra.mxu0 %v303
    %323 = vmatprep.subr.bf16.mxu0 0
    %324 = vmatpush1.bf16.msra.mxu0 %v302
    %325 = vmatprep.subr.bf16.mxu0 0
    %326 = vmatpush2.bf16.msra.mxu0 0
    %327 = vmatprep.subr.bf16.mxu0 0
    %328 = vmatpush2.bf16.msra.mxu0 0
    %329 = vmatprep.subr.bf16.mxu0 0
    %330 = vmatpush2.bf16.msra.mxu0 0
    %331 = vmatprep.subr.bf16.mxu0 0
    %332 = vmatpush2.bf16.msra.mxu0 0
    %333 = vmatprep.subr.bf16.mxu0 0
    %334 = vmatpush2.bf16.msra.mxu0 0
    %335 = vmatprep.subr.bf16.mxu0 0
    %336 = vmatpush2.bf16.msra.mxu0 0
    %337 = vmatprep.subr.bf16.mxu0 0
    %338 = vmatpush2.bf16.msra.mxu0 0
    %339 = vmatprep.subr.bf16.mxu0 0
    %340 = vmatpush2.bf16.msra.mxu0 0
    %341 = vmatprep.mubr.bf16.mxu0 0
    %342 = vmatmul.mubr.bf16.gmra.mxu0 %v307
    %v343 = vpop.f32.mrf.mxu0
    %v344 = vadd.f32 %v292, %v343
    %v345 = vpop.f32.mrf.mxu0
    %v346 = vpop.f32.mrf.mxu0
    %v347 = vpop.f32.mrf.mxu0
    %348 = vdwg.mxu0
    %349 = vst [vmem:[#allocation10] sm:$0xff] %v344
    // Predicated region
    $region46: #{tpu_custom_call.1} parent=1 // pred_check
      _
    $region47: #{tpu_custom_call.1} parent=1 // pred_check_branch
      %351 = sbr.rel (0) target = $region49
    $region48: #{tpu_custom_call.1} parent=1 // pred_region
      %s353 = ssub.s32 128, 128
      %354 = vsyncadd [#allocation4], %s353
      %s356 = sshll.u32 [#allocation10], 4
      %s357 = int_to_ptr.vmem [resolvable:$true] %s356
      %359 = dma.vmem_to_hbm [thread:$0]  %s357, 128, %s7, [#allocation4]
    $region49: #{tpu_custom_call.1} parent=1 // pred_fallthru
      _
    // Predicated region
    $region50: #{tpu_custom_call.1} parent=1 // pred_check
      _
    $region51: #{tpu_custom_call.1} parent=1 // pred_check_branch
      %361 = sbr.rel (0) target = $region53
    $region52: #{tpu_custom_call.1} parent=1 // pred_region
      %362 = dma.done [#allocation4], 128
    $region53: #{tpu_custom_call.1} parent=1 // pred_fallthru
      _
    %363 = vsyncpa [#allocation3], 1
    %364 = vsyncpa [#allocation6], 1
    %365 = vsyncpa [#allocation9], 1
    %366 = vsyncpa [#allocation4], 1

</llo_original>
